<compile_context>
chip_gen: v7x
topology: tpu7x:2x2x1
jax: 0.10.0
libtpu: 0.0.40
codegen_flags: <defaults>
</compile_context>

<pallas_src>
import math

import jax
import jax.numpy as jnp
from jax.experimental import pallas as pl
from jax.experimental.pallas import tpu as pltpu


def _mlp_kernel(x_ref, w_ref, wd_ref, o_ref):
    # x_ref : (tm, D)   rows of x in natural layout (streamed)
    # w_ref : (2I, D)   stacked [gate_proj; up_proj] weights (PyTorch (out,in)), resident
    # wd_ref: (I, 1)    down_proj weight column, f32, resident
    # o_ref : (1, tm)   lane-dense per-row outputs (plain unmasked stores)
    x = x_ref[...]
    w = w_ref[...]
    # Single MXU pass per tile: contract (2I, D) with (tm, D) on D -> (2I, tm),
    # f32 accumulation. Mosaic handles the operand transpose in VMEM.
    gu = jax.lax.dot_general(
        w, x,
        dimension_numbers=(((1,), (1,)), ((), ())),
        preferred_element_type=jnp.float32,
    )
    i_half = wd_ref.shape[0]
    g = gu[:i_half, :]                      # (I, tm) f32, sublane-aligned slice
    u = gu[i_half:, :]                      # (I, tm) f32
    # SiLU gating in f32 (sigmoid on the EUP slot, muls on the VPU).
    h = (g * jax.nn.sigmoid(g)) * u
    # down_proj applied in f32 (kept out of the bf16 weight cast), then a
    # sublane reduction -> already lane-dense (1, tm).
    o_ref[...] = jnp.sum(h * wd_ref[...], axis=0, keepdims=True).astype(o_ref.dtype)


def _round_up(a, b):
    return ((a + b - 1) // b) * b


def mlp_pallas(x, w_gate, w_up, w_down, *, tm=2048, compute_dtype=jnp.bfloat16,
               vmem_budget_bytes=40 << 20):
    """Gated-MLP head: down_proj(silu(gate_proj(x)) * up_proj(x)).

    x       : (..., D)
    w_gate  : (I, D)   PyTorch nn.Linear layout (out, in)
    w_up    : (I, D)
    w_down  : (1, I)
    compute_dtype: dtype for the matmul inputs (default bf16). Gating math,
                   down_proj scaling and accumulation stay float32.
    """
    lead = x.shape[:-1]
    D = x.shape[-1]
    I = w_gate.shape[0]
    M = int(math.prod(lead)) if lead else 1
    cdt = compute_dtype if compute_dtype is not None else x.dtype
    cdt_bytes = jnp.dtype(cdt).itemsize

    # ---- row tile -----------------------------------------------------------
    # Lane-dense multiple of 128; for moderate M make at least 2 tiles so the
    # "parallel" grid axis can shard across v7x's two TensorCores.
    tm_cap = _round_up(max(-(-M // 2), 1), 128) if M > 128 else 128
    tm_eff = max(128, min(_round_up(tm, 128), tm_cap))

    def footprint(t):
        w_res = 2 * (2 * I * D * cdt_bytes + I * 4)      # resident weight blocks
        x_io = 2 * t * D * cdt_bytes + 2 * t * 4         # double-buffered x / out
        tmp = 4 * (2 * I) * t * 4                        # gu / g / u / h f32 temps
        return w_res + x_io + tmp

    # Shrink the tile if the estimated VMEM footprint would blow the budget
    # (budget chosen to stay portable to v7x's 64 MiB physical VMEM).
    while tm_eff > 128 and footprint(tm_eff) > vmem_budget_bytes:
        tm_eff = max(128, _round_up(tm_eff // 2, 128))

    n_tiles = -(-M // tm_eff)
    m_alloc = n_tiles * tm_eff   # output padded to whole tiles -> unmasked stores

    # ---- operands (no wrapper-side transpose / pad of x) --------------------
    x2 = x.reshape(M, D).astype(cdt)
    w_stack = jnp.concatenate([w_gate, w_up], axis=0).astype(cdt)   # (2I, D)
    wd = w_down.reshape(I, 1).astype(jnp.float32)                   # applied in f32

    vmem_limit = int(min(max(footprint(tm_eff) * 2, 32 << 20), 60 << 20))

    out = pl.pallas_call(
        _mlp_kernel,
        out_shape=jax.ShapeDtypeStruct((1, m_alloc), jnp.float32),
        grid_spec=pl.GridSpec(
            grid=(n_tiles,),
            in_specs=[
                pl.BlockSpec((tm_eff, D), lambda i: (i, 0)),    # x rows: streamed
                pl.BlockSpec((2 * I, D), lambda i: (0, 0)),     # stacked weights: resident
                pl.BlockSpec((I, 1), lambda i: (0, 0)),         # down_proj column: resident
            ],
            out_specs=pl.BlockSpec((1, tm_eff), lambda i: (0, i)),
        ),
        compiler_params=pltpu.CompilerParams(
            dimension_semantics=("parallel",),                  # shards across v7x TCs
            vmem_limit_bytes=vmem_limit,
        ),
    )(x2, w_stack, wd)

    return out[0, :M].astype(x.dtype).reshape(*lead, 1)


def mlp_reference(x, w_gate, w_up, w_down):
    g = x @ w_gate.T
    u = x @ w_up.T
    h = (g * jax.nn.sigmoid(g)) * u
    return h @ w_down.T


if __name__ == "__main__":
    # Small shapes consistent with the module: latent_dim=32 -> intermediate=128.
    B, S, D = 2, 8, 32
    I = 4 * D

    key = jax.random.PRNGKey(0)
    kx, kg, ku, kd, kx2 = jax.random.split(key, 5)

    x = jax.random.normal(kx, (B, S, D), dtype=jnp.float32)
    # Weights in PyTorch nn.Linear layout (out, in).
    w_gate = jax.random.normal(kg, (I, D), dtype=jnp.float32) * 0.05
    w_up = jax.random.normal(ku, (I, D), dtype=jnp.float32) * 0.05
    w_down = jax.random.normal(kd, (1, I), dtype=jnp.float32) * 0.05

    ref = mlp_reference(x, w_gate, w_up, w_down)

    # f32 matmul path (single tile, tight tolerance).
    out_f32 = jax.block_until_ready(
        mlp_pallas(x, w_gate, w_up, w_down, compute_dtype=jnp.float32))
    assert out_f32.shape == (B, S, 1), out_f32.shape
    assert jnp.allclose(out_f32, ref, atol=2e-4, rtol=2e-4), "f32 mismatch vs reference"

    # Default bf16 streaming path (gating/down_proj/accumulation stay f32).
    out_bf16 = jax.block_until_ready(mlp_pallas(x, w_gate, w_up, w_down))
    assert jnp.allclose(out_bf16, ref, atol=2e-2, rtol=1e-1), "bf16 mismatch"

    # Larger, non-divisible row count: exercises the partial boundary block and
    # the multi-tile parallel grid (no wrapper-side padding of x).
    B2, S2 = 4, 100
    x2 = jax.random.normal(kx2, (B2, S2, D), dtype=jnp.float32)
    ref2 = mlp_reference(x2, w_gate, w_up, w_down)

    out2 = jax.block_until_ready(
        mlp_pallas(x2, w_gate, w_up, w_down, compute_dtype=jnp.float32))
    assert out2.shape == (B2, S2, 1), out2.shape
    assert jnp.allclose(out2, ref2, atol=2e-4, rtol=2e-4), "tiled f32 mismatch"

    out2_bf16 = jax.block_until_ready(mlp_pallas(x2, w_gate, w_up, w_down))
    assert jnp.allclose(out2_bf16, ref2, atol=2e-2, rtol=1e-1), "tiled bf16 mismatch"

    print("KERNEL_OK")
</pallas_src>

<mosaic_0001>
module attributes {stable_mosaic.version = 11 : i64} {
  func.func @_mlp_kernel(%arg0: i32, %arg1: memref<128x32xf32, #tpu.memory_space<vmem>>, %arg2: memref<256x32xf32, #tpu.memory_space<vmem>>, %arg3: memref<128x1xf32, #tpu.memory_space<vmem>>, %arg4: memref<1x128xf32, #tpu.memory_space<vmem>>) attributes {dimension_semantics = [#tpu.dimension_semantics<parallel>], iteration_bounds = array<i64: 1>, scalar_prefetch = 0 : i64, scratch_operands = 0 : i64, tpu.core_type = #tpu.core_type<tc>, window_params = [{transform_indices = @transform_0, window_bounds = array<i64: 128, 32>}, {pipeline_mode = #tpu.pipeline_mode<synchronous>, transform_indices = @transform_1, window_bounds = array<i64: 256, 32>}, {pipeline_mode = #tpu.pipeline_mode<synchronous>, transform_indices = @transform_2, window_bounds = array<i64: 128, 1>}, {transform_indices = @transform_3, window_bounds = array<i64: 1, 128>}]} {
    %c0 = arith.constant 0 : index
    %c0_0 = arith.constant 0 : index
    %0 = vector.load %arg1[%c0, %c0_0] : memref<128x32xf32, #tpu.memory_space<vmem>>, vector<128x32xf32>
    %c0_1 = arith.constant 0 : index
    %c0_2 = arith.constant 0 : index
    %1 = vector.load %arg2[%c0_1, %c0_2] : memref<256x32xf32, #tpu.memory_space<vmem>>, vector<256x32xf32>
    %cst = arith.constant dense<0.000000e+00> : vector<256x128xf32>
    %2 = tpu.matmul %1, %0, %cst {dimension_numbers = #tpu.dot_dimension_numbers<[1], [1], [0], [0], [0, 0, 1, 0], [], []>} : vector<256x32xf32>, vector<128x32xf32>, vector<256x128xf32> -> vector<256x128xf32>
    %3 = vector.extract_strided_slice %2 {offsets = [0, 0], sizes = [128, 128], strides = [1, 1]} : vector<256x128xf32> to vector<128x128xf32>
    %4 = vector.extract_strided_slice %2 {offsets = [128, 0], sizes = [128, 128], strides = [1, 1]} : vector<256x128xf32> to vector<128x128xf32>
    %5 = arith.negf %3 : vector<128x128xf32>
    %6 = math.exp %5 : vector<128x128xf32>
    %cst_3 = arith.constant 1.000000e+00 : f32
    %7 = vector.broadcast %cst_3 : f32 to vector<128x128xf32>
    %8 = arith.addf %7, %6 : vector<128x128xf32>
    %9 = arith.divf %7, %8 : vector<128x128xf32>
    %10 = arith.mulf %3, %9 : vector<128x128xf32>
    %11 = arith.mulf %10, %4 : vector<128x128xf32>
    %c0_4 = arith.constant 0 : index
    %c0_5 = arith.constant 0 : index
    %12 = vector.load %arg3[%c0_4, %c0_5] : memref<128x1xf32, #tpu.memory_space<vmem>>, vector<128x1xf32>
    %13 = vector.broadcast %12 : vector<128x1xf32> to vector<128x128xf32>
    %14 = arith.mulf %11, %13 : vector<128x128xf32>
    %cst_6 = arith.constant dense<0.000000e+00> : vector<128xf32>
    %15 = vector.multi_reduction <add>, %14, %cst_6 [0] : vector<128x128xf32> to vector<128xf32>
    %16 = vector.shape_cast %15 : vector<128xf32> to vector<1x128xf32>
    %c0_7 = arith.constant 0 : index
    %c0_8 = arith.constant 0 : index
    %17 = vector.load %arg4[%c0_7, %c0_8] : memref<1x128xf32, #tpu.memory_space<vmem>>, vector<1x128xf32>
    tpu.vector_store %arg4[%c0_7, %c0_8], %16 {strides = array<i32>} : memref<1x128xf32, #tpu.memory_space<vmem>>, vector<1x128xf32>,
    return
  }
  func.func @transform_0(%arg0: i32) -> (i32, i32) {
    %c0_i32 = arith.constant 0 : i32
    %c0_i32_0 = arith.constant 0 : i32
    return %arg0, %c0_i32 : i32, i32
  }
  func.func @transform_1(%arg0: i32) -> (i32, i32) {
    %c0_i32 = arith.constant 0 : i32
    %c0_i32_0 = arith.constant 0 : i32
    %c0_i32_1 = arith.constant 0 : i32
    return %c0_i32, %c0_i32_0 : i32, i32
  }
  func.func @transform_2(%arg0: i32) -> (i32, i32) {
    %c0_i32 = arith.constant 0 : i32
    %c0_i32_0 = arith.constant 0 : i32
    %c0_i32_1 = arith.constant 0 : i32
    return %c0_i32, %c0_i32_0 : i32, i32
  }
  func.func @transform_3(%arg0: i32) -> (i32, i32) {
    %c0_i32 = arith.constant 0 : i32
    %c0_i32_0 = arith.constant 0 : i32
    return %c0_i32, %arg0 : i32, i32
  }
}

</mosaic_0001>

<llo_original>
// kernel: tpu_custom_call.1
$region0: #{tpu_custom_call.1}
  #allocation0 [shape = 'u32[]', space=smem, size = 0x4, offset = 0x4, fixed_abs, tag = 'smem constant byte address 0x4 - core index']
  #allocation1 [shape = 'u32[144,128]{1,0:T(1,128)}', space=vmem, size = 0x12000, scoped, tag = 'internal scratch']
  %s0 = inlined_call_operand.vmem [shape: f32[16,32], index: 0, kind: input, shape index: {}]
  %s1 = inlined_call_operand.vmem [shape: f32[256,32], index: 1, kind: input, shape index: {}]
  %s2 = inlined_call_operand.vmem [shape: f32[128,1], index: 2, kind: input, shape index: {}]
  %s3 = inlined_call_operand.hbm [shape: f32[1,128], index: 3, kind: output, shape index: {}]
  %s4 = sld [smem:[#allocation0]]
  $region22: #{tpu_custom_call.1} parent=0
    _
  %s6 = ssub.s32 1, %s4
  %s7 = scalar_select 0, %s6, %s4
  $region1: #{tpu_custom_call.1} parent=0
    #allocation2 [shape = 'u8[512]{0}', space=vmem, size = 0x400, scoped, tag = 'output window, operand 0, single buffered']
    #allocation3 [shape = 's32[1]{0}', space=sflag, size = 0x4, scoped, tag = 'scoped memory for tpu_custom_call.1']
    %8 = vsyncpa [#allocation3], 0
    // Predicated region
    $region2: #{tpu_custom_call.1} parent=1 // pred_check
      _
    $region3: #{tpu_custom_call.1} parent=1 // pred_check_branch
      %10 = sbr.rel (0) target = $region5
    $region4: #{tpu_custom_call.1} parent=1 // pred_region
      _
    $region5: #{tpu_custom_call.1} parent=1 // pred_fallthru
      _
    // Predicated region
    $region6: #{tpu_custom_call.1} parent=1 // pred_check
      _
    $region7: #{tpu_custom_call.1} parent=1 // pred_check_branch
      %12 = sbr.rel (0) target = $region9
    $region8: #{tpu_custom_call.1} parent=1 // pred_region
      _
    $region9: #{tpu_custom_call.1} parent=1 // pred_fallthru
      _
    // Predicated region
    $region10: #{tpu_custom_call.1} parent=1 // pred_check
      _
    $region11: #{tpu_custom_call.1} parent=1 // pred_check_branch
      %14 = sbr.rel (0) target = $region13
    $region12: #{tpu_custom_call.1} parent=1 // pred_region
      _
    $region13: #{tpu_custom_call.1} parent=1 // pred_fallthru
      _
    %v15 = vld [vmem:[%s0] sm:$0xff]
    %v16 = vld [vmem:[%s0 + $0x8] sm:$0xff]
    %v17 = vld [vmem:[%s0 + $0x10] sm:$0xff]
    %v18 = vld [vmem:[%s0 + $0x18] sm:$0xff]
    %v19 = vld [vmem:[%s0 + $0x20] sm:$0xff]
    %v20 = vld [vmem:[%s0 + $0x28] sm:$0xff]
    %v21 = vld [vmem:[%s0 + $0x30] sm:$0xff]
    %v22 = vld [vmem:[%s0 + $0x38] sm:$0xff]
    %v23 = vld [vmem:[%s0 + $0x40] sm:$0xff]
    %v24 = vld [vmem:[%s0 + $0x48] sm:$0xff]
    %v25 = vld [vmem:[%s0 + $0x50] sm:$0xff]
    %v26 = vld [vmem:[%s0 + $0x58] sm:$0xff]
    %v27 = vld [vmem:[%s0 + $0x60] sm:$0xff]
    %v28 = vld [vmem:[%s0 + $0x68] sm:$0xff]
    %v29 = vld [vmem:[%s0 + $0x70] sm:$0xff]
    %v30 = vld [vmem:[%s0 + $0x78] sm:$0xff]
    %v31 = vld [vmem:[%s1] sm:$0xff]
    %v32 = vld [vmem:[%s1 + $0x8] sm:$0xff]
    %v33 = vld [vmem:[%s1 + $0x10] sm:$0xff]
    %v34 = vld [vmem:[%s1 + $0x18] sm:$0xff]
    %v35 = vld [vmem:[%s1 + $0x20] sm:$0xff]
    %v36 = vld [vmem:[%s1 + $0x28] sm:$0xff]
    %v37 = vld [vmem:[%s1 + $0x30] sm:$0xff]
    %v38 = vld [vmem:[%s1 + $0x38] sm:$0xff]
    %v39 = vld [vmem:[%s1 + $0x40] sm:$0xff]
    %v40 = vld [vmem:[%s1 + $0x48] sm:$0xff]
    %v41 = vld [vmem:[%s1 + $0x50] sm:$0xff]
    %v42 = vld [vmem:[%s1 + $0x58] sm:$0xff]
    %v43 = vld [vmem:[%s1 + $0x60] sm:$0xff]
    %v44 = vld [vmem:[%s1 + $0x68] sm:$0xff]
    %v45 = vld [vmem:[%s1 + $0x70] sm:$0xff]
    %v46 = vld [vmem:[%s1 + $0x78] sm:$0xff]
    %v47 = vld [vmem:[%s1 + $0x80] sm:$0xff]
    %v48 = vld [vmem:[%s1 + $0x88] sm:$0xff]
    %v49 = vld [vmem:[%s1 + $0x90] sm:$0xff]
    %v50 = vld [vmem:[%s1 + $0x98] sm:$0xff]
    %v51 = vld [vmem:[%s1 + $0xa0] sm:$0xff]
    %v52 = vld [vmem:[%s1 + $0xa8] sm:$0xff]
    %v53 = vld [vmem:[%s1 + $0xb0] sm:$0xff]
    %v54 = vld [vmem:[%s1 + $0xb8] sm:$0xff]
    %v55 = vld [vmem:[%s1 + $0xc0] sm:$0xff]
    %v56 = vld [vmem:[%s1 + $0xc8] sm:$0xff]
    %v57 = vld [vmem:[%s1 + $0xd0] sm:$0xff]
    %v58 = vld [vmem:[%s1 + $0xd8] sm:$0xff]
    %v59 = vld [vmem:[%s1 + $0xe0] sm:$0xff]
    %v60 = vld [vmem:[%s1 + $0xe8] sm:$0xff]
    %v61 = vld [vmem:[%s1 + $0xf0] sm:$0xff]
    %v62 = vld [vmem:[%s1 + $0xf8] sm:$0xff]
    %vm63 = vcmask 261120
    %v65 = vsel %vm63, %v31, 0
    %v68 = vsel %vm63, %v32, 0
    %v71 = vsel %vm63, %v33, 0
    %v74 = vsel %vm63, %v34, 0
    %v77 = vsel %vm63, %v35, 0
    %v80 = vsel %vm63, %v36, 0
    %v83 = vsel %vm63, %v37, 0
    %v86 = vsel %vm63, %v38, 0
    %v89 = vsel %vm63, %v39, 0
    %v92 = vsel %vm63, %v40, 0
    %v95 = vsel %vm63, %v41, 0
    %v98 = vsel %vm63, %v42, 0
    %v101 = vsel %vm63, %v43, 0
    %v104 = vsel %vm63, %v44, 0
    %v107 = vsel %vm63, %v45, 0
    %v110 = vsel %vm63, %v46, 0
    %v113 = vsel %vm63, %v47, 0
    %v116 = vsel %vm63, %v48, 0
    %v119 = vsel %vm63, %v49, 0
    %v122 = vsel %vm63, %v50, 0
    %v125 = vsel %vm63, %v51, 0
    %v128 = vsel %vm63, %v52, 0
    %v131 = vsel %vm63, %v53, 0
    %v134 = vsel %vm63, %v54, 0
    %v137 = vsel %vm63, %v55, 0
    %v140 = vsel %vm63, %v56, 0
    %v143 = vsel %vm63, %v57, 0
    %v146 = vsel %vm63, %v58, 0
    %v149 = vsel %vm63, %v59, 0
    %v152 = vsel %vm63, %v60, 0
    %v155 = vsel %vm63, %v61, 0
    %v158 = vsel %vm63, %v62, 0
    %v161 = vsel %vm63, %v15, 0
    %v164 = vsel %vm63, %v16, 0
    %v167 = vsel %vm63, %v17, 0
    %v170 = vsel %vm63, %v18, 0
    %v173 = vsel %vm63, %v19, 0
    %v176 = vsel %vm63, %v20, 0
    %v179 = vsel %vm63, %v21, 0
    %v182 = vsel %vm63, %v22, 0
    %v185 = vsel %vm63, %v23, 0
    %v188 = vsel %vm63, %v24, 0
    %v191 = vsel %vm63, %v25, 0
    %v194 = vsel %vm63, %v26, 0
    %v197 = vsel %vm63, %v27, 0
    %v200 = vsel %vm63, %v28, 0
    %v203 = vsel %vm63, %v29, 0
    %v206 = vsel %vm63, %v30, 0
    %208 = vmatprep.subr.mxu0 0.0
    %209 = vmatpush1.xpose.msra.mxu0 %v161
    %210 = vmatprep.subr.mxu0 0.0
    %211 = vmatpush1.xpose.msra.mxu0 %v164
    %212 = vmatprep.subr.mxu0 0.0
    %213 = vmatpush1.xpose.msra.mxu0 %v167
    %214 = vmatprep.subr.mxu0 0.0
    %215 = vmatpush1.xpose.msra.mxu0 %v170
    %216 = vmatprep.subr.mxu0 0.0
    %217 = vmatpush1.xpose.msra.mxu0 %v173
    %218 = vmatprep.subr.mxu0 0.0
    %219 = vmatpush1.xpose.msra.mxu0 %v176
    %220 = vmatprep.subr.mxu0 0.0
    %221 = vmatpush1.xpose.msra.mxu0 %v179
    %222 = vmatprep.subr.mxu0 0.0
    %223 = vmatpush1.xpose.msra.mxu0 %v182
    %224 = vmatprep.subr.mxu0 0.0
    %225 = vmatpush1.xpose.msra.mxu0 %v185
    %226 = vmatprep.subr.mxu0 0.0
    %227 = vmatpush1.xpose.msra.mxu0 %v188
    %228 = vmatprep.subr.mxu0 0.0
    %229 = vmatpush1.xpose.msra.mxu0 %v191
    %230 = vmatprep.subr.mxu0 0.0
    %231 = vmatpush1.xpose.msra.mxu0 %v194
    %232 = vmatprep.subr.mxu0 0.0
    %233 = vmatpush1.xpose.msra.mxu0 %v197
    %234 = vmatprep.subr.mxu0 0.0
    %235 = vmatpush1.xpose.msra.mxu0 %v200
    %236 = vmatprep.subr.mxu0 0.0
    %237 = vmatpush1.xpose.msra.mxu0 %v203
    %238 = vmatprep.subr.mxu0 0.0
    %239 = vmatpush1.xpose.msra.mxu0 %v206
    %240 = vmatprep.subr.mxu0 0.0
    %241 = vmatpush1.xpose.msra.mxu0 0.0
    %242 = vmatprep.subr.mxu0 0.0
    %243 = vmatpush1.xpose.msra.mxu0 0.0
    %244 = vmatprep.subr.mxu0 0.0
    %245 = vmatpush1.xpose.msra.mxu0 0.0
    %246 = vmatprep.subr.mxu0 0.0
    %247 = vmatpush1.xpose.msra.mxu0 0.0
    %248 = vmatprep.subr.mxu0 0.0
    %249 = vmatpush1.xpose.msra.mxu0 0.0
    %250 = vmatprep.subr.mxu0 0.0
    %251 = vmatpush1.xpose.msra.mxu0 0.0
    %252 = vmatprep.subr.mxu0 0.0
    %253 = vmatpush1.xpose.msra.mxu0 0.0
    %254 = vmatprep.subr.mxu0 0.0
    %255 = vmatpush1.xpose.msra.mxu0 0.0
    %256 = vmatprep.subr.mxu0 0.0
    %257 = vmatpush1.xpose.msra.mxu0 0.0
    %258 = vmatprep.subr.mxu0 0.0
    %259 = vmatpush1.xpose.msra.mxu0 0.0
    %260 = vmatprep.subr.mxu0 0.0
    %261 = vmatpush1.xpose.msra.mxu0 0.0
    %262 = vmatprep.subr.mxu0 0.0
    %263 = vmatpush1.xpose.msra.mxu0 0.0
    %264 = vmatprep.subr.mxu0 0.0
    %265 = vmatpush1.xpose.msra.mxu0 0.0
    %266 = vmatprep.subr.mxu0 0.0
    %267 = vmatpush1.xpose.msra.mxu0 0.0
    %268 = vmatprep.subr.mxu0 0.0
    %269 = vmatpush1.xpose.msra.mxu0 0.0
    %270 = vmatprep.subr.mxu0 0.0
    %271 = vmatpush1.xpose.msra.mxu0 0.0
    %272 = vmatprep.mubr.f32.mxu0 0.0
    %273 = vmatmul.mubr.f32.gmra.mrb[0].mxu0 %v65
    %v274 = vpop.f32.mrb[0].mxu0
    %v275 = vadd.f32 0.0, %v274
    %v276 = vpop.f32.mrb[0].mxu0
    %277 = vmatprep.mubr.f32.mxu0 0.0
    %278 = vmatmul.mubr.f32.gmra.mrb[0].mxu0 %v68
    %v279 = vpop.f32.mrb[0].mxu0
    %v280 = vadd.f32 0.0, %v279
    %v281 = vpop.f32.mrb[0].mxu0
    %282 = vmatprep.mubr.f32.mxu0 0.0
    %283 = vmatmul.mubr.f32.gmra.mrb[0].mxu0 %v71
    %v284 = vpop.f32.mrb[0].mxu0
    %v285 = vadd.f32 0.0, %v284
    %v286 = vpop.f32.mrb[0].mxu0
    %287 = vmatprep.mubr.f32.mxu0 0.0
    %288 = vmatmul.mubr.f32.gmra.mrb[0].mxu0 %v74
    %v289 = vpop.f32.mrb[0].mxu0
    %v290 = vadd.f32 0.0, %v289
    %v291 = vpop.f32.mrb[0].mxu0
    %292 = vmatprep.mubr.f32.mxu0 0.0
    %293 = vmatmul.mubr.f32.gmra.mrb[0].mxu0 %v77
    %v294 = vpop.f32.mrb[0].mxu0
    %v295 = vadd.f32 0.0, %v294
    %v296 = vpop.f32.mrb[0].mxu0
    %297 = vmatprep.mubr.f32.mxu0 0.0
    %298 = vmatmul.mubr.f32.gmra.mrb[0].mxu0 %v80
    %v299 = vpop.f32.mrb[0].mxu0
    %v300 = vadd.f32 0.0, %v299
    %v301 = vpop.f32.mrb[0].mxu0
    %302 = vmatprep.mubr.f32.mxu0 0.0
    %303 = vmatmul.mubr.f32.gmra.mrb[0].mxu0 %v83
    %v304 = vpop.f32.mrb[0].mxu0
    %v305 = vadd.f32 0.0, %v304
    %v306 = vpop.f32.mrb[0].mxu0
    %307 = vmatprep.mubr.f32.mxu0 0.0
    %308 = vmatmul.mubr.f32.gmra.mrb[0].mxu0 %v86
    %v309 = vpop.f32.mrb[0].mxu0
    %v310 = vadd.f32 0.0, %v309
    %v311 = vpop.f32.mrb[0].mxu0
    %312 = vmatprep.mubr.f32.mxu0 0.0
    %313 = vmatmul.mubr.f32.gmra.mrb[0].mxu0 %v89
    %v314 = vpop.f32.mrb[0].mxu0
    %v315 = vadd.f32 0.0, %v314
    %v316 = vpop.f32.mrb[0].mxu0
    %317 = vmatprep.mubr.f32.mxu0 0.0
    %318 = vmatmul.mubr.f32.gmra.mrb[0].mxu0 %v92
    %v319 = vpop.f32.mrb[0].mxu0
    %v320 = vadd.f32 0.0, %v319
    %v321 = vpop.f32.mrb[0].mxu0
    %322 = vmatprep.mubr.f32.mxu0 0.0
    %323 = vmatmul.mubr.f32.gmra.mrb[0].mxu0 %v95
    %v324 = vpop.f32.mrb[0].mxu0
    %v325 = vadd.f32 0.0, %v324
    %v326 = vpop.f32.mrb[0].mxu0
    %327 = vmatprep.mubr.f32.mxu0 0.0
    %328 = vmatmul.mubr.f32.gmra.mrb[0].mxu0 %v98
    %v329 = vpop.f32.mrb[0].mxu0
    %v330 = vadd.f32 0.0, %v329
    %v331 = vpop.f32.mrb[0].mxu0
    %332 = vmatprep.mubr.f32.mxu0 0.0
    %333 = vmatmul.mubr.f32.gmra.mrb[0].mxu0 %v101
    %v334 = vpop.f32.mrb[0].mxu0
    %v335 = vadd.f32 0.0, %v334
    %v336 = vpop.f32.mrb[0].mxu0
    %337 = vmatprep.mubr.f32.mxu0 0.0
    %338 = vmatmul.mubr.f32.gmra.mrb[0].mxu0 %v104
    %v339 = vpop.f32.mrb[0].mxu0
    %v340 = vadd.f32 0.0, %v339
    %v341 = vpop.f32.mrb[0].mxu0
    %342 = vmatprep.mubr.f32.mxu0 0.0
    %343 = vmatmul.mubr.f32.gmra.mrb[0].mxu0 %v107
    %v344 = vpop.f32.mrb[0].mxu0
    %v345 = vadd.f32 0.0, %v344
    %v346 = vpop.f32.mrb[0].mxu0
    %347 = vmatprep.mubr.f32.mxu0 0.0
    %348 = vmatmul.mubr.f32.gmra.mrb[0].mxu0 %v110
    %v349 = vpop.f32.mrb[0].mxu0
    %v350 = vadd.f32 0.0, %v349
    %v351 = vpop.f32.mrb[0].mxu0
    %352 = vmatprep.mubr.f32.mxu0 0.0
    %353 = vmatmul.mubr.f32.gmra.mrb[0].mxu0 %v113
    %v354 = vpop.f32.mrb[0].mxu0
    %v355 = vadd.f32 0.0, %v354
    %v356 = vpop.f32.mrb[0].mxu0
    %357 = vmatprep.mubr.f32.mxu0 0.0
    %358 = vmatmul.mubr.f32.gmra.mrb[0].mxu0 %v116
    %v359 = vpop.f32.mrb[0].mxu0
    %v360 = vadd.f32 0.0, %v359
    %v361 = vpop.f32.mrb[0].mxu0
    %362 = vmatprep.mubr.f32.mxu0 0.0
    %363 = vmatmul.mubr.f32.gmra.mrb[0].mxu0 %v119
    %v364 = vpop.f32.mrb[0].mxu0
    %v365 = vadd.f32 0.0, %v364
    %v366 = vpop.f32.mrb[0].mxu0
    %367 = vmatprep.mubr.f32.mxu0 0.0
    %368 = vmatmul.mubr.f32.gmra.mrb[0].mxu0 %v122
    %v369 = vpop.f32.mrb[0].mxu0
    %v370 = vadd.f32 0.0, %v369
    %v371 = vpop.f32.mrb[0].mxu0
    %372 = vmatprep.mubr.f32.mxu0 0.0
    %373 = vmatmul.mubr.f32.gmra.mrb[0].mxu0 %v125
    %v374 = vpop.f32.mrb[0].mxu0
    %v375 = vadd.f32 0.0, %v374
    %v376 = vpop.f32.mrb[0].mxu0
    %377 = vmatprep.mubr.f32.mxu0 0.0
    %378 = vmatmul.mubr.f32.gmra.mrb[0].mxu0 %v128
    %v379 = vpop.f32.mrb[0].mxu0
    %v380 = vadd.f32 0.0, %v379
    %v381 = vpop.f32.mrb[0].mxu0
    %382 = vmatprep.mubr.f32.mxu0 0.0
    %383 = vmatmul.mubr.f32.gmra.mrb[0].mxu0 %v131
    %v384 = vpop.f32.mrb[0].mxu0
    %v385 = vadd.f32 0.0, %v384
    %v386 = vpop.f32.mrb[0].mxu0
    %387 = vmatprep.mubr.f32.mxu0 0.0
    %388 = vmatmul.mubr.f32.gmra.mrb[0].mxu0 %v134
    %v389 = vpop.f32.mrb[0].mxu0
    %v390 = vadd.f32 0.0, %v389
    %v391 = vpop.f32.mrb[0].mxu0
    %392 = vmatprep.mubr.f32.mxu0 0.0
    %393 = vmatmul.mubr.f32.gmra.mrb[0].mxu0 %v137
    %v394 = vpop.f32.mrb[0].mxu0
    %v395 = vadd.f32 0.0, %v394
    %v396 = vpop.f32.mrb[0].mxu0
    %397 = vmatprep.mubr.f32.mxu0 0.0
    %398 = vmatmul.mubr.f32.gmra.mrb[0].mxu0 %v140
    %v399 = vpop.f32.mrb[0].mxu0
    %v400 = vadd.f32 0.0, %v399
    %v401 = vpop.f32.mrb[0].mxu0
    %402 = vmatprep.mubr.f32.mxu0 0.0
    %403 = vmatmul.mubr.f32.gmra.mrb[0].mxu0 %v143
    %v404 = vpop.f32.mrb[0].mxu0
    %v405 = vadd.f32 0.0, %v404
    %v406 = vpop.f32.mrb[0].mxu0
    %407 = vmatprep.mubr.f32.mxu0 0.0
    %408 = vmatmul.mubr.f32.gmra.mrb[0].mxu0 %v146
    %v409 = vpop.f32.mrb[0].mxu0
    %v410 = vadd.f32 0.0, %v409
    %v411 = vpop.f32.mrb[0].mxu0
    %412 = vmatprep.mubr.f32.mxu0 0.0
    %413 = vmatmul.mubr.f32.gmra.mrb[0].mxu0 %v149
    %v414 = vpop.f32.mrb[0].mxu0
    %v415 = vadd.f32 0.0, %v414
    %v416 = vpop.f32.mrb[0].mxu0
    %417 = vmatprep.mubr.f32.mxu0 0.0
    %418 = vmatmul.mubr.f32.gmra.mrb[0].mxu0 %v152
    %v419 = vpop.f32.mrb[0].mxu0
    %v420 = vadd.f32 0.0, %v419
    %v421 = vpop.f32.mrb[0].mxu0
    %422 = vmatprep.mubr.f32.mxu0 0.0
    %423 = vmatmul.mubr.f32.gmra.mrb[0].mxu0 %v155
    %v424 = vpop.f32.mrb[0].mxu0
    %v425 = vadd.f32 0.0, %v424
    %v426 = vpop.f32.mrb[0].mxu0
    %427 = vmatprep.mubr.f32.mxu0 0.0
    %428 = vmatmul.mubr.f32.gmra.mrb[0].mxu0 %v158
    %v429 = vpop.f32.mrb[0].mxu0
    %v430 = vadd.f32 0.0, %v429
    %v431 = vpop.f32.mrb[0].mxu0
    %432 = vdwg.mxu0
    %v433 = vxor.u32 %v275, 2147483648
    %v434 = vxor.u32 %v280, 2147483648
    %v435 = vxor.u32 %v285, 2147483648
    %v436 = vxor.u32 %v290, 2147483648
    %v437 = vxor.u32 %v295, 2147483648
    %v438 = vxor.u32 %v300, 2147483648
    %v439 = vxor.u32 %v305, 2147483648
    %v440 = vxor.u32 %v310, 2147483648
    %v441 = vxor.u32 %v315, 2147483648
    %v442 = vxor.u32 %v320, 2147483648
    %v443 = vxor.u32 %v325, 2147483648
    %v444 = vxor.u32 %v330, 2147483648
    %v445 = vxor.u32 %v335, 2147483648
    %v446 = vxor.u32 %v340, 2147483648
    %v447 = vxor.u32 %v345, 2147483648
    %v448 = vxor.u32 %v350, 2147483648
    %v449 = vmul.f32 %v433, 1.442695
    %v450 = vpow.pop %v449
    %v451 = vmul.f32 %v434, 1.442695
    %v452 = vpow.pop %v451
    %v453 = vmul.f32 %v435, 1.442695
    %v454 = vpow.pop %v453
    %v455 = vmul.f32 %v436, 1.442695
    %v456 = vpow.pop %v455
    %v457 = vmul.f32 %v437, 1.442695
    %v458 = vpow.pop %v457
    %v459 = vmul.f32 %v438, 1.442695
    %v460 = vpow.pop %v459
    %v461 = vmul.f32 %v439, 1.442695
    %v462 = vpow.pop %v461
    %v463 = vmul.f32 %v440, 1.442695
    %v464 = vpow.pop %v463
    %v465 = vmul.f32 %v441, 1.442695
    %v466 = vpow.pop %v465
    %v467 = vmul.f32 %v442, 1.442695
    %v468 = vpow.pop %v467
    %v469 = vmul.f32 %v443, 1.442695
    %v470 = vpow.pop %v469
    %v471 = vmul.f32 %v444, 1.442695
    %v472 = vpow.pop %v471
    %v473 = vmul.f32 %v445, 1.442695
    %v474 = vpow.pop %v473
    %v475 = vmul.f32 %v446, 1.442695
    %v476 = vpow.pop %v475
    %v477 = vmul.f32 %v447, 1.442695
    %v478 = vpow.pop %v477
    %v479 = vmul.f32 %v448, 1.442695
    %v480 = vpow.pop %v479
    %v481 = vadd.f32 %v450, 1.0
    %v482 = vadd.f32 %v452, 1.0
    %v483 = vadd.f32 %v454, 1.0
    %v484 = vadd.f32 %v456, 1.0
    %v485 = vadd.f32 %v458, 1.0
    %v486 = vadd.f32 %v460, 1.0
    %v487 = vadd.f32 %v462, 1.0
    %v488 = vadd.f32 %v464, 1.0
    %v489 = vadd.f32 %v466, 1.0
    %v490 = vadd.f32 %v468, 1.0
    %v491 = vadd.f32 %v470, 1.0
    %v492 = vadd.f32 %v472, 1.0
    %v493 = vadd.f32 %v474, 1.0
    %v494 = vadd.f32 %v476, 1.0
    %v495 = vadd.f32 %v478, 1.0
    %v496 = vadd.f32 %v480, 1.0
    %v497 = vrcp.pop %v481
    %v498 = vmul.f32 1.0, %v497
    %v499 = vrcp.pop %v482
    %v500 = vmul.f32 1.0, %v499
    %v501 = vrcp.pop %v483
    %v502 = vmul.f32 1.0, %v501
    %v503 = vrcp.pop %v484
    %v504 = vmul.f32 1.0, %v503
    %v505 = vrcp.pop %v485
    %v506 = vmul.f32 1.0, %v505
    %v507 = vrcp.pop %v486
    %v508 = vmul.f32 1.0, %v507
    %v509 = vrcp.pop %v487
    %v510 = vmul.f32 1.0, %v509
    %v511 = vrcp.pop %v488
    %v512 = vmul.f32 1.0, %v511
    %v513 = vrcp.pop %v489
    %v514 = vmul.f32 1.0, %v513
    %v515 = vrcp.pop %v490
    %v516 = vmul.f32 1.0, %v515
    %v517 = vrcp.pop %v491
    %v518 = vmul.f32 1.0, %v517
    %v519 = vrcp.pop %v492
    %v520 = vmul.f32 1.0, %v519
    %v521 = vrcp.pop %v493
    %v522 = vmul.f32 1.0, %v521
    %v523 = vrcp.pop %v494
    %v524 = vmul.f32 1.0, %v523
    %v525 = vrcp.pop %v495
    %v526 = vmul.f32 1.0, %v525
    %v527 = vrcp.pop %v496
    %v528 = vmul.f32 1.0, %v527
    %v529 = vmul.f32 %v275, %v498
    %v530 = vmul.f32 %v280, %v500
    %v531 = vmul.f32 %v285, %v502
    %v532 = vmul.f32 %v290, %v504
    %v533 = vmul.f32 %v295, %v506
    %v534 = vmul.f32 %v300, %v508
    %v535 = vmul.f32 %v305, %v510
    %v536 = vmul.f32 %v310, %v512
    %v537 = vmul.f32 %v315, %v514
    %v538 = vmul.f32 %v320, %v516
    %v539 = vmul.f32 %v325, %v518
    %v540 = vmul.f32 %v330, %v520
    %v541 = vmul.f32 %v335, %v522
    %v542 = vmul.f32 %v340, %v524
    %v543 = vmul.f32 %v345, %v526
    %v544 = vmul.f32 %v350, %v528
    %v545 = vmul.f32 %v529, %v355
    %v546 = vmul.f32 %v530, %v360
    %v547 = vmul.f32 %v531, %v365
    %v548 = vmul.f32 %v532, %v370
    %v549 = vmul.f32 %v533, %v375
    %v550 = vmul.f32 %v534, %v380
    %v551 = vmul.f32 %v535, %v385
    %v552 = vmul.f32 %v536, %v390
    %v553 = vmul.f32 %v537, %v395
    %v554 = vmul.f32 %v538, %v400
    %v555 = vmul.f32 %v539, %v405
    %v556 = vmul.f32 %v540, %v410
    %v557 = vmul.f32 %v541, %v415
    %v558 = vmul.f32 %v542, %v420
    %v559 = vmul.f32 %v543, %v425
    %v560 = vmul.f32 %v544, %v430
    %v561 = vld [vmem:[%s2] sm:$0xff]
    %v562 = vld [vmem:[%s2 + $0x8] sm:$0xff]
    %v563 = vld [vmem:[%s2 + $0x10] sm:$0xff]
    %v564 = vld [vmem:[%s2 + $0x18] sm:$0xff]
    %v565 = vld [vmem:[%s2 + $0x20] sm:$0xff]
    %v566 = vld [vmem:[%s2 + $0x28] sm:$0xff]
    %v567 = vld [vmem:[%s2 + $0x30] sm:$0xff]
    %v568 = vld [vmem:[%s2 + $0x38] sm:$0xff]
    %v569 = vld [vmem:[%s2 + $0x40] sm:$0xff]
    %v570 = vld [vmem:[%s2 + $0x48] sm:$0xff]
    %v571 = vld [vmem:[%s2 + $0x50] sm:$0xff]
    %v572 = vld [vmem:[%s2 + $0x58] sm:$0xff]
    %v573 = vld [vmem:[%s2 + $0x60] sm:$0xff]
    %v574 = vld [vmem:[%s2 + $0x68] sm:$0xff]
    %v575 = vld [vmem:[%s2 + $0x70] sm:$0xff]
    %v576 = vld [vmem:[%s2 + $0x78] sm:$0xff]
    %578 = vset.pattern.permute.xlu0 0
    %579 = vperm.xlu0 %578, %v561
    %v580 = vpop.permute.xlu0 %579
    %583 = vset.pattern.permute.xlu0 0
    %584 = vperm.xlu0 %583, %v562
    %v585 = vpop.permute.xlu0 %584
    %588 = vset.pattern.permute.xlu0 0
    %589 = vperm.xlu0 %588, %v563
    %v590 = vpop.permute.xlu0 %589
    %593 = vset.pattern.permute.xlu0 0
    %594 = vperm.xlu0 %593, %v564
    %v595 = vpop.permute.xlu0 %594
    %598 = vset.pattern.permute.xlu0 0
    %599 = vperm.xlu0 %598, %v565
    %v600 = vpop.permute.xlu0 %599
    %603 = vset.pattern.permute.xlu0 0
    %604 = vperm.xlu0 %603, %v566
    %v605 = vpop.permute.xlu0 %604
    %608 = vset.pattern.permute.xlu0 0
    %609 = vperm.xlu0 %608, %v567
    %v610 = vpop.permute.xlu0 %609
    %613 = vset.pattern.permute.xlu0 0
    %614 = vperm.xlu0 %613, %v568
    %v615 = vpop.permute.xlu0 %614
    %618 = vset.pattern.permute.xlu0 0
    %619 = vperm.xlu0 %618, %v569
    %v620 = vpop.permute.xlu0 %619
    %623 = vset.pattern.permute.xlu0 0
    %624 = vperm.xlu0 %623, %v570
    %v625 = vpop.permute.xlu0 %624
    %628 = vset.pattern.permute.xlu0 0
    %629 = vperm.xlu0 %628, %v571
    %v630 = vpop.permute.xlu0 %629
    %633 = vset.pattern.permute.xlu0 0
    %634 = vperm.xlu0 %633, %v572
    %v635 = vpop.permute.xlu0 %634
    %638 = vset.pattern.permute.xlu0 0
    %639 = vperm.xlu0 %638, %v573
    %v640 = vpop.permute.xlu0 %639
    %643 = vset.pattern.permute.xlu0 0
    %644 = vperm.xlu0 %643, %v574
    %v645 = vpop.permute.xlu0 %644
    %648 = vset.pattern.permute.xlu0 0
    %649 = vperm.xlu0 %648, %v575
    %v650 = vpop.permute.xlu0 %649
    %653 = vset.pattern.permute.xlu0 0
    %654 = vperm.xlu0 %653, %v576
    %v655 = vpop.permute.xlu0 %654
    %v657 = vmul.f32 %v545, %v580
    %v658 = vmul.f32 %v546, %v585
    %v659 = vmul.f32 %v547, %v590
    %v660 = vmul.f32 %v548, %v595
    %v661 = vmul.f32 %v549, %v600
    %v662 = vmul.f32 %v550, %v605
    %v663 = vmul.f32 %v551, %v610
    %v664 = vmul.f32 %v552, %v615
    %v665 = vmul.f32 %v553, %v620
    %v666 = vmul.f32 %v554, %v625
    %v667 = vmul.f32 %v555, %v630
    %v668 = vmul.f32 %v556, %v635
    %v669 = vmul.f32 %v557, %v640
    %v670 = vmul.f32 %v558, %v645
    %v671 = vmul.f32 %v559, %v650
    %v672 = vmul.f32 %v560, %v655
    %v673 = vadd.f32 %v657, %v658
    %v674 = vadd.f32 %v673, %v659
    %v675 = vadd.f32 %v674, %v660
    %v676 = vadd.f32 %v675, %v661
    %v677 = vadd.f32 %v676, %v662
    %v678 = vadd.f32 %v677, %v663
    %v679 = vadd.f32 %v678, %v664
    %v680 = vadd.f32 %v679, %v665
    %v681 = vadd.f32 %v680, %v666
    %v682 = vadd.f32 %v681, %v667
    %v683 = vadd.f32 %v682, %v668
    %v684 = vadd.f32 %v683, %v669
    %v685 = vadd.f32 %v684, %v670
    %v686 = vadd.f32 %v685, %v671
    %v687 = vadd.f32 %v686, %v672
    %v688 = vrot.slane %v687, 4
    %v689 = vadd.f32 %v687, %v688
    %v690 = vrot.slane %v689, 2
    %v691 = vadd.f32 %v689, %v690
    %v692 = vrot.slane %v691, 1
    %v693 = vadd.f32 %v691, %v692
    %694 = vst [vmem:[#allocation2] sm:$0x1] %v693
    // Predicated region
    $region14: #{tpu_custom_call.1} parent=1 // pred_check
      _
    $region15: #{tpu_custom_call.1} parent=1 // pred_check_branch
      %696 = sbr.rel (0) target = $region17
    $region16: #{tpu_custom_call.1} parent=1 // pred_region
      %s698 = ssub.s32 16, 16
      %699 = vsyncadd [#allocation3], %s698
      %s701 = sshll.u32 [#allocation2], 4
      %s702 = int_to_ptr.vmem [resolvable:$true] %s701
      %704 = dma.vmem_to_hbm [thread:$0]  %s702, 16, %s3, [#allocation3]
    $region17: #{tpu_custom_call.1} parent=1 // pred_fallthru
      _
    // Predicated region
    $region18: #{tpu_custom_call.1} parent=1 // pred_check
      _
    $region19: #{tpu_custom_call.1} parent=1 // pred_check_branch
      %706 = sbr.rel (0) target = $region21
    $region20: #{tpu_custom_call.1} parent=1 // pred_region
      %707 = dma.done [#allocation3], 16
    $region21: #{tpu_custom_call.1} parent=1 // pred_fallthru
      _
    %708 = vsyncpa [#allocation3], 1

</llo_original>
